<compile_context>
chip_gen: v5e
topology: v5e:2x2
jax: 0.10.0
libtpu: 0.0.40
codegen_flags: <defaults>
</compile_context>

<pallas_src>
import jax
import jax.numpy as jnp
from jax.experimental import pallas as pl
from jax.experimental.pallas import tpu as pltpu

EPS = 1e-5        # nn.BatchNorm1d default eps
OUT_LANES = 128   # lane-dense head-output slab width (n_out is padded up to this)


def _mlp_kernel(x_ref, w1_ref, w2_ref, w3_ref, w4_ref, vec_ref, o_ref):
    """Whole MLP (3 hidden layers + head) on one VMEM-resident row block.

    x_ref  : (N, n_in)        bf16 activations, N = B*T
    w1..w3 : (in, H)          bf16 hidden weights
    w4_ref : (H, OUT_LANES)   bf16 head weights, output lanes zero-padded
    vec_ref: (8, H)           f32 packed vectors: rows 0/2/4 = gamma1..3,
                              rows 1/3/5 = beta1..3, row 6[:OUT_LANES] = head bias
    o_ref  : (N, OUT_LANES)   f32 lane-dense output slab (wrapper slices [:, :n_out])
    """

    def hidden_layer(h, w_ref, g, be):
        # Linear WITHOUT bias: the per-feature bias is exactly removed by the
        # BatchNorm mean subtraction, so it is dropped (math no-op).
        # bf16 MXU inputs, f32 accumulation.
        y = jnp.dot(h.astype(jnp.bfloat16), w_ref[...],
                    preferred_element_type=jnp.float32)
        # Training-mode BatchNorm1d over all N rows (== stats over B and T after
        # MyBatchNorm's transpose), biased variance, eps=1e-5.
        # One-pass stats + fused affine.
        mean = jnp.mean(y, axis=0, keepdims=True)
        var = jnp.maximum(jnp.mean(y * y, axis=0, keepdims=True) - mean * mean, 0.0)
        scale = g * jax.lax.rsqrt(var + EPS)
        shift = be - mean * scale
        return jnp.maximum(y * scale + shift, 0.0)  # ReLU

    h = x_ref[...]
    h = hidden_layer(h, w1_ref, vec_ref[0:1, :], vec_ref[1:2, :])
    h = hidden_layer(h, w2_ref, vec_ref[2:3, :], vec_ref[3:4, :])
    h = hidden_layer(h, w3_ref, vec_ref[4:5, :], vec_ref[5:6, :])
    # Head: lane-dense padded output; padded columns stay zero (zero W cols + zero bias).
    o_ref[...] = (jnp.dot(h.astype(jnp.bfloat16), w4_ref[...],
                          preferred_element_type=jnp.float32)
                  + vec_ref[6:7, :OUT_LANES]).astype(o_ref.dtype)


def init_mlp_params(key, n_in, n_out, n_hidden=256, n_hidden_layers=3):
    """Deterministic init mimicking nn.Linear (uniform(-1/sqrt(fan_in), +)) and
    BatchNorm1d (gamma=1, beta=0). Hidden biases are kept in the param tree for
    fidelity to the PyTorch module even though the kernel does not need them."""
    params = []
    dims = [n_in] + [n_hidden] * n_hidden_layers
    for i in range(n_hidden_layers):
        fan_in, fan_out = dims[i], dims[i + 1]
        key, kw, kb = jax.random.split(key, 3)
        bound = 1.0 / (fan_in ** 0.5)
        w = jax.random.uniform(kw, (fan_in, fan_out), jnp.float32, -bound, bound)
        b = jax.random.uniform(kb, (1, fan_out), jnp.float32, -bound, bound)
        gamma = jnp.ones((1, fan_out), jnp.float32)
        beta = jnp.zeros((1, fan_out), jnp.float32)
        params.append((w, b, gamma, beta))
    key, kw, kb = jax.random.split(key, 3)
    bound = 1.0 / (n_hidden ** 0.5)
    w = jax.random.uniform(kw, (n_hidden, n_out), jnp.float32, -bound, bound)
    b = jax.random.uniform(kb, (1, n_out), jnp.float32, -bound, bound)
    params.append((w, b))
    return params


def mlp_model_forward(x, params, state):
    """Equivalent of MLPModel.forward(x, state) for an int input_sizes.

    x: (B, T, ...) -> flattened to (B*T, n_in) for the kernel.
    Returns ((B, T, n_out) output, state).
    """
    B, T = x.shape[:2]
    # bf16 activations on the wire: layer-1 matmul consumes bf16 anyway, so this
    # halves the x DMA with no extra precision loss vs. casting inside the kernel.
    x2d = x.reshape(B, T, -1).reshape(B * T, -1).astype(jnp.bfloat16)
    N = x2d.shape[0]

    (w1, _b1, g1, be1), (w2, _b2, g2, be2), (w3, _b3, g3, be3), (w4, b4) = params
    n_hidden = w1.shape[1]
    n_out = w4.shape[1]
    assert n_hidden % 128 == 0 and n_out <= OUT_LANES and n_hidden >= OUT_LANES

    # bf16 weights for MXU throughput (accumulation stays f32 in-kernel).
    # Hidden biases b1..b3 intentionally not passed (BatchNorm cancels them).
    w1b = w1.astype(jnp.bfloat16)
    w2b = w2.astype(jnp.bfloat16)
    w3b = w3.astype(jnp.bfloat16)
    w4p = (jnp.zeros((n_hidden, OUT_LANES), jnp.float32)
           .at[:, :n_out].set(w4)).astype(jnp.bfloat16)

    # Pack all small per-feature vectors into a single (8, n_hidden) array -> one DMA.
    vec = jnp.zeros((8, n_hidden), jnp.float32)
    vec = vec.at[0, :].set(g1[0]).at[1, :].set(be1[0])
    vec = vec.at[2, :].set(g2[0]).at[3, :].set(be2[0])
    vec = vec.at[4, :].set(g3[0]).at[5, :].set(be3[0])
    vec = vec.at[6, :n_out].set(b4[0])

    # Single-block design: everything fits in VMEM as full-array blocks (no grid).
    # TODO(synk): for large B*T this must move to a row grid with a two-pass
    # BatchNorm (cross-tile sum/sumsq accumulation) — per-tile stats would be
    # numerically wrong; resident-row ceiling is ~halved on v7x (64 MiB VMEM/TC).
    out2d = pl.pallas_call(
        _mlp_kernel,
        out_shape=jax.ShapeDtypeStruct((N, OUT_LANES), jnp.float32),
        in_specs=[pl.BlockSpec(memory_space=pltpu.MemorySpace.VMEM)] * 6,
        out_specs=pl.BlockSpec(memory_space=pltpu.MemorySpace.VMEM),
        compiler_params=pltpu.CompilerParams(
            vmem_limit_bytes=48 * 1024 * 1024),
    )(x2d, w1b, w2b, w3b, w4p, vec)

    return out2d[:, :n_out].reshape(B, T, n_out), state


def _reference_forward(x, params):
    """Pure-JAX f32 reference with full PyTorch semantics (incl. hidden biases)."""
    B, T = x.shape[:2]
    h = x.reshape(B * T, -1).astype(jnp.float32)
    for (w, b, g, be) in params[:-1]:
        h = h @ w + b
        mean = jnp.mean(h, axis=0, keepdims=True)
        var = jnp.mean((h - mean) ** 2, axis=0, keepdims=True)
        h = (h - mean) * jax.lax.rsqrt(var + EPS) * g + be
        h = jnp.maximum(h, 0.0)
    w, b = params[-1]
    h = h @ w + b
    return h.reshape(B, T, -1)


if __name__ == "__main__":
    # Small shapes consistent with the module defaults: input_sizes=16 (int),
    # output_size=8, n_hidden=256, n_hidden_layers=3, norm='batch'.
    B, T, N_IN, N_OUT, N_HIDDEN = 2, 8, 16, 8, 256

    key = jax.random.PRNGKey(0)
    k_x, k_p = jax.random.split(key)
    x = jax.random.normal(k_x, (B, T, N_IN), dtype=jnp.float32)
    params = init_mlp_params(k_p, N_IN, N_OUT, n_hidden=N_HIDDEN, n_hidden_layers=3)
    state = (None,)  # MLPModel.zero_state(batch_size)

    out, state = mlp_model_forward(x, params, state)
    out = jax.block_until_ready(out)
    assert out.shape == (B, T, N_OUT), out.shape
    assert jnp.all(jnp.isfinite(out))

    # Cross-check against an f32 reference with the original (biased) hidden layers;
    # loose tolerance accounts for bf16 matmul operands in the kernel.
    ref = _reference_forward(x, params)
    max_err = float(jnp.max(jnp.abs(out - ref)))
    assert jnp.allclose(out, ref, atol=2e-1, rtol=2e-1), max_err

    print("KERNEL_OK")
</pallas_src>

<mosaic_0001>
module attributes {stable_mosaic.version = 11 : i64} {
  func.func @_mlp_kernel(%arg0: memref<16x16xbf16, #tpu.memory_space<vmem>>, %arg1: memref<16x256xbf16, #tpu.memory_space<vmem>>, %arg2: memref<256x256xbf16, #tpu.memory_space<vmem>>, %arg3: memref<256x256xbf16, #tpu.memory_space<vmem>>, %arg4: memref<256x128xbf16, #tpu.memory_space<vmem>>, %arg5: memref<8x256xf32, #tpu.memory_space<vmem>>, %arg6: memref<16x128xf32, #tpu.memory_space<vmem>>) attributes {dimension_semantics = [], scalar_prefetch = 0 : i64, scratch_operands = 0 : i64, tpu.core_type = #tpu.core_type<tc>} {
    %c0 = arith.constant 0 : index
    %c0_0 = arith.constant 0 : index
    %0 = vector.load %arg0[%c0, %c0_0] : memref<16x16xbf16, #tpu.memory_space<vmem>>, vector<16x16xbf16>
    %c0_1 = arith.constant 0 : index
    %c0_2 = arith.constant 0 : index
    %1 = vector.load %arg5[%c0_1, %c0_2] : memref<8x256xf32, #tpu.memory_space<vmem>>, vector<1x256xf32>
    %c1 = arith.constant 1 : index
    %c0_3 = arith.constant 0 : index
    %2 = vector.load %arg5[%c1, %c0_3] : memref<8x256xf32, #tpu.memory_space<vmem>>, vector<1x256xf32>
    %c0_4 = arith.constant 0 : index
    %c0_5 = arith.constant 0 : index
    %3 = vector.load %arg1[%c0_4, %c0_5] : memref<16x256xbf16, #tpu.memory_space<vmem>>, vector<16x256xbf16>
    %cst = arith.constant dense<0.000000e+00> : vector<16x256xf32>
    %4 = tpu.matmul %0, %3, %cst {dimension_numbers = #tpu.dot_dimension_numbers<[1], [0], [0], [1], [0, 0, 1, 1], [], []>} : vector<16x16xbf16>, vector<16x256xbf16>, vector<16x256xf32> -> vector<16x256xf32>
    %cst_6 = arith.constant dense<0.000000e+00> : vector<256xf32>
    %5 = vector.multi_reduction <add>, %4, %cst_6 [0] : vector<16x256xf32> to vector<256xf32>
    %6 = vector.shape_cast %5 : vector<256xf32> to vector<1x256xf32>
    %cst_7 = arith.constant 1.600000e+01 : f32
    %7 = vector.broadcast %cst_7 : f32 to vector<1x256xf32>
    %8 = arith.divf %6, %7 : vector<1x256xf32>
    %9 = arith.mulf %4, %4 : vector<16x256xf32>
    %cst_8 = arith.constant dense<0.000000e+00> : vector<256xf32>
    %10 = vector.multi_reduction <add>, %9, %cst_8 [0] : vector<16x256xf32> to vector<256xf32>
    %11 = vector.shape_cast %10 : vector<256xf32> to vector<1x256xf32>
    %cst_9 = arith.constant 1.600000e+01 : f32
    %12 = vector.broadcast %cst_9 : f32 to vector<1x256xf32>
    %13 = arith.divf %11, %12 : vector<1x256xf32>
    %14 = arith.mulf %8, %8 : vector<1x256xf32>
    %15 = arith.subf %13, %14 : vector<1x256xf32>
    %cst_10 = arith.constant 0.000000e+00 : f32
    %16 = vector.broadcast %cst_10 : f32 to vector<1x256xf32>
    %17 = arith.maximumf %15, %16 : vector<1x256xf32>
    %cst_11 = arith.constant 9.99999974E-6 : f32
    %18 = vector.broadcast %cst_11 : f32 to vector<1x256xf32>
    %19 = arith.addf %17, %18 : vector<1x256xf32>
    %20 = math.rsqrt %19 : vector<1x256xf32>
    %21 = arith.mulf %1, %20 : vector<1x256xf32>
    %22 = arith.mulf %8, %21 : vector<1x256xf32>
    %23 = arith.subf %2, %22 : vector<1x256xf32>
    %24 = vector.broadcast %21 : vector<1x256xf32> to vector<16x256xf32>
    %25 = arith.mulf %4, %24 : vector<16x256xf32>
    %26 = vector.broadcast %23 : vector<1x256xf32> to vector<16x256xf32>
    %27 = arith.addf %25, %26 : vector<16x256xf32>
    %cst_12 = arith.constant 0.000000e+00 : f32
    %28 = vector.broadcast %cst_12 : f32 to vector<16x256xf32>
    %29 = arith.maximumf %27, %28 : vector<16x256xf32>
    %c2 = arith.constant 2 : index
    %c0_13 = arith.constant 0 : index
    %30 = vector.load %arg5[%c2, %c0_13] : memref<8x256xf32, #tpu.memory_space<vmem>>, vector<1x256xf32>
    %c3 = arith.constant 3 : index
    %c0_14 = arith.constant 0 : index
    %31 = vector.load %arg5[%c3, %c0_14] : memref<8x256xf32, #tpu.memory_space<vmem>>, vector<1x256xf32>
    %32 = arith.truncf %29 : vector<16x256xf32> to vector<16x256xbf16>
    %c0_15 = arith.constant 0 : index
    %c0_16 = arith.constant 0 : index
    %33 = vector.load %arg2[%c0_15, %c0_16] : memref<256x256xbf16, #tpu.memory_space<vmem>>, vector<256x256xbf16>
    %cst_17 = arith.constant dense<0.000000e+00> : vector<16x256xf32>
    %34 = tpu.matmul %32, %33, %cst_17 {dimension_numbers = #tpu.dot_dimension_numbers<[1], [0], [0], [1], [0, 0, 1, 1], [], []>} : vector<16x256xbf16>, vector<256x256xbf16>, vector<16x256xf32> -> vector<16x256xf32>
    %cst_18 = arith.constant dense<0.000000e+00> : vector<256xf32>
    %35 = vector.multi_reduction <add>, %34, %cst_18 [0] : vector<16x256xf32> to vector<256xf32>
    %36 = vector.shape_cast %35 : vector<256xf32> to vector<1x256xf32>
    %cst_19 = arith.constant 1.600000e+01 : f32
    %37 = vector.broadcast %cst_19 : f32 to vector<1x256xf32>
    %38 = arith.divf %36, %37 : vector<1x256xf32>
    %39 = arith.mulf %34, %34 : vector<16x256xf32>
    %cst_20 = arith.constant dense<0.000000e+00> : vector<256xf32>
    %40 = vector.multi_reduction <add>, %39, %cst_20 [0] : vector<16x256xf32> to vector<256xf32>
    %41 = vector.shape_cast %40 : vector<256xf32> to vector<1x256xf32>
    %cst_21 = arith.constant 1.600000e+01 : f32
    %42 = vector.broadcast %cst_21 : f32 to vector<1x256xf32>
    %43 = arith.divf %41, %42 : vector<1x256xf32>
    %44 = arith.mulf %38, %38 : vector<1x256xf32>
    %45 = arith.subf %43, %44 : vector<1x256xf32>
    %cst_22 = arith.constant 0.000000e+00 : f32
    %46 = vector.broadcast %cst_22 : f32 to vector<1x256xf32>
    %47 = arith.maximumf %45, %46 : vector<1x256xf32>
    %cst_23 = arith.constant 9.99999974E-6 : f32
    %48 = vector.broadcast %cst_23 : f32 to vector<1x256xf32>
    %49 = arith.addf %47, %48 : vector<1x256xf32>
    %50 = math.rsqrt %49 : vector<1x256xf32>
    %51 = arith.mulf %30, %50 : vector<1x256xf32>
    %52 = arith.mulf %38, %51 : vector<1x256xf32>
    %53 = arith.subf %31, %52 : vector<1x256xf32>
    %54 = vector.broadcast %51 : vector<1x256xf32> to vector<16x256xf32>
    %55 = arith.mulf %34, %54 : vector<16x256xf32>
    %56 = vector.broadcast %53 : vector<1x256xf32> to vector<16x256xf32>
    %57 = arith.addf %55, %56 : vector<16x256xf32>
    %cst_24 = arith.constant 0.000000e+00 : f32
    %58 = vector.broadcast %cst_24 : f32 to vector<16x256xf32>
    %59 = arith.maximumf %57, %58 : vector<16x256xf32>
    %c4 = arith.constant 4 : index
    %c0_25 = arith.constant 0 : index
    %60 = vector.load %arg5[%c4, %c0_25] : memref<8x256xf32, #tpu.memory_space<vmem>>, vector<1x256xf32>
    %c5 = arith.constant 5 : index
    %c0_26 = arith.constant 0 : index
    %61 = vector.load %arg5[%c5, %c0_26] : memref<8x256xf32, #tpu.memory_space<vmem>>, vector<1x256xf32>
    %62 = arith.truncf %59 : vector<16x256xf32> to vector<16x256xbf16>
    %c0_27 = arith.constant 0 : index
    %c0_28 = arith.constant 0 : index
    %63 = vector.load %arg3[%c0_27, %c0_28] : memref<256x256xbf16, #tpu.memory_space<vmem>>, vector<256x256xbf16>
    %cst_29 = arith.constant dense<0.000000e+00> : vector<16x256xf32>
    %64 = tpu.matmul %62, %63, %cst_29 {dimension_numbers = #tpu.dot_dimension_numbers<[1], [0], [0], [1], [0, 0, 1, 1], [], []>} : vector<16x256xbf16>, vector<256x256xbf16>, vector<16x256xf32> -> vector<16x256xf32>
    %cst_30 = arith.constant dense<0.000000e+00> : vector<256xf32>
    %65 = vector.multi_reduction <add>, %64, %cst_30 [0] : vector<16x256xf32> to vector<256xf32>
    %66 = vector.shape_cast %65 : vector<256xf32> to vector<1x256xf32>
    %cst_31 = arith.constant 1.600000e+01 : f32
    %67 = vector.broadcast %cst_31 : f32 to vector<1x256xf32>
    %68 = arith.divf %66, %67 : vector<1x256xf32>
    %69 = arith.mulf %64, %64 : vector<16x256xf32>
    %cst_32 = arith.constant dense<0.000000e+00> : vector<256xf32>
    %70 = vector.multi_reduction <add>, %69, %cst_32 [0] : vector<16x256xf32> to vector<256xf32>
    %71 = vector.shape_cast %70 : vector<256xf32> to vector<1x256xf32>
    %cst_33 = arith.constant 1.600000e+01 : f32
    %72 = vector.broadcast %cst_33 : f32 to vector<1x256xf32>
    %73 = arith.divf %71, %72 : vector<1x256xf32>
    %74 = arith.mulf %68, %68 : vector<1x256xf32>
    %75 = arith.subf %73, %74 : vector<1x256xf32>
    %cst_34 = arith.constant 0.000000e+00 : f32
    %76 = vector.broadcast %cst_34 : f32 to vector<1x256xf32>
    %77 = arith.maximumf %75, %76 : vector<1x256xf32>
    %cst_35 = arith.constant 9.99999974E-6 : f32
    %78 = vector.broadcast %cst_35 : f32 to vector<1x256xf32>
    %79 = arith.addf %77, %78 : vector<1x256xf32>
    %80 = math.rsqrt %79 : vector<1x256xf32>
    %81 = arith.mulf %60, %80 : vector<1x256xf32>
    %82 = arith.mulf %68, %81 : vector<1x256xf32>
    %83 = arith.subf %61, %82 : vector<1x256xf32>
    %84 = vector.broadcast %81 : vector<1x256xf32> to vector<16x256xf32>
    %85 = arith.mulf %64, %84 : vector<16x256xf32>
    %86 = vector.broadcast %83 : vector<1x256xf32> to vector<16x256xf32>
    %87 = arith.addf %85, %86 : vector<16x256xf32>
    %cst_36 = arith.constant 0.000000e+00 : f32
    %88 = vector.broadcast %cst_36 : f32 to vector<16x256xf32>
    %89 = arith.maximumf %87, %88 : vector<16x256xf32>
    %90 = arith.truncf %89 : vector<16x256xf32> to vector<16x256xbf16>
    %c0_37 = arith.constant 0 : index
    %c0_38 = arith.constant 0 : index
    %91 = vector.load %arg4[%c0_37, %c0_38] : memref<256x128xbf16, #tpu.memory_space<vmem>>, vector<256x128xbf16>
    %cst_39 = arith.constant dense<0.000000e+00> : vector<16x128xf32>
    %92 = tpu.matmul %90, %91, %cst_39 {dimension_numbers = #tpu.dot_dimension_numbers<[1], [0], [0], [1], [0, 0, 1, 1], [], []>} : vector<16x256xbf16>, vector<256x128xbf16>, vector<16x128xf32> -> vector<16x128xf32>
    %c6 = arith.constant 6 : index
    %c0_40 = arith.constant 0 : index
    %93 = vector.load %arg5[%c6, %c0_40] : memref<8x256xf32, #tpu.memory_space<vmem>>, vector<1x128xf32>
    %94 = vector.broadcast %93 : vector<1x128xf32> to vector<16x128xf32>
    %95 = arith.addf %92, %94 : vector<16x128xf32>
    %c0_41 = arith.constant 0 : index
    %c0_42 = arith.constant 0 : index
    %96 = vector.load %arg6[%c0_41, %c0_42] : memref<16x128xf32, #tpu.memory_space<vmem>>, vector<16x128xf32>
    tpu.vector_store %arg6[%c0_41, %c0_42], %95 {strides = array<i32>} : memref<16x128xf32, #tpu.memory_space<vmem>>, vector<16x128xf32>,
    return
  }
}

</mosaic_0001>

<llo_original>
// kernel: tpu_custom_call.1
$region0: #{tpu_custom_call.1}
  #allocation0 [shape = 'u32[]', space=smem, size = 0x4, offset = 0x4, fixed_abs, tag = 'smem constant byte address 0x4 - core index']
  #allocation1 [shape = 'u32[72,128]{1,0:T(1,128)}', space=vmem, size = 0x9000, scoped, tag = 'internal scratch']
  %s0 = inlined_call_operand.hbm [shape: bf16[16,16], index: 0, kind: input, shape index: {}]
  %s1 = inlined_call_operand.hbm [shape: bf16[16,256], index: 1, kind: input, shape index: {}]
  %s2 = inlined_call_operand.hbm [shape: bf16[256,256], index: 2, kind: input, shape index: {}]
  %s3 = inlined_call_operand.hbm [shape: bf16[256,256], index: 3, kind: input, shape index: {}]
  %s4 = inlined_call_operand.hbm [shape: bf16[256,128], index: 4, kind: input, shape index: {}]
  %s5 = inlined_call_operand.hbm [shape: f32[8,256], index: 5, kind: input, shape index: {}]
  %s6 = inlined_call_operand.hbm [shape: f32[16,128], index: 6, kind: output, shape index: {}]
  %s7 = sld [smem:[#allocation0]]
  $region58: #{tpu_custom_call.1} parent=0
    _
  %s9 = ssub.s32 1, %s7
  %s10 = scalar_select 0, %s9, %s7
  $region1: #{tpu_custom_call.1} parent=0
    #allocation2 [shape = 'u8[4096]{0}', space=vmem, size = 0x1000, scoped, tag = 'input window, operand 0, single buffered']
    #allocation3 [shape = 's32[1]{0}', space=sflag, size = 0x4, scoped, tag = 'scoped memory for tpu_custom_call.1']
    #allocation4 [shape = 's32[1]{0}', space=sflag, size = 0x4, scoped, tag = 'scoped memory for tpu_custom_call.1']
    #allocation5 [shape = 'u8[8192]{0}', space=vmem, size = 0x2000, scoped, tag = 'input window, operand 1, single buffered']
    #allocation6 [shape = 's32[1]{0}', space=sflag, size = 0x4, scoped, tag = 'scoped memory for tpu_custom_call.1']
    #allocation7 [shape = 'u8[131072]{0}', space=vmem, size = 0x20000, scoped, tag = 'input window, operand 2, single buffered']
    #allocation8 [shape = 'u8[131072]{0}', space=vmem, size = 0x20000, scoped, tag = 'input window, operand 3, single buffered']
    #allocation9 [shape = 's32[1]{0}', space=sflag, size = 0x4, scoped, tag = 'scoped memory for tpu_custom_call.1']
    #allocation10 [shape = 'u8[65536]{0}', space=vmem, size = 0x10000, scoped, tag = 'input window, operand 4, single buffered']
    #allocation11 [shape = 'u8[8192]{0}', space=vmem, size = 0x2000, scoped, tag = 'input window, operand 5, single buffered']
    #allocation12 [shape = 's32[1]{0}', space=sflag, size = 0x4, scoped, tag = 'scoped memory for tpu_custom_call.1']
    #allocation13 [shape = 'u8[8192]{0}', space=vmem, size = 0x2000, scoped, tag = 'output window, operand 0, single buffered']
    %11 = vsyncpa [#allocation3], 0
    %12 = vsyncpa [#allocation6], 0
    %13 = vsyncpa [#allocation9], 0
    %14 = vsyncpa [#allocation12], 0
    %15 = vsyncpa [#allocation4], 0
    // Predicated region
    $region2: #{tpu_custom_call.1} parent=1 // pred_check
      _
    $region3: #{tpu_custom_call.1} parent=1 // pred_check_branch
      %17 = sbr.rel (0) target = $region5
    $region4: #{tpu_custom_call.1} parent=1 // pred_region
      %19 = vsyncadd [#allocation3], 0
      %s20 = sshll.u32 %s0, 4
      %s21 = int_to_ptr.hbm [resolvable:$true] %s20
      %s22 = sshll.u32 [#allocation2], 4
      %s23 = int_to_ptr.vmem [resolvable:$true] %s22
      %28 = dma.hbm_to_vmem [thread:$0]  %s21, 128, %s23, [#allocation3], 64, 64, 4
    $region5: #{tpu_custom_call.1} parent=1 // pred_fallthru
      _
    // Predicated region
    $region6: #{tpu_custom_call.1} parent=1 // pred_check
      _
    $region7: #{tpu_custom_call.1} parent=1 // pred_check_branch
      %30 = sbr.rel (0) target = $region9
    $region8: #{tpu_custom_call.1} parent=1 // pred_region
      %32 = vsyncadd [#allocation6], 0
      %s33 = sshll.u32 %s1, 4
      %s34 = int_to_ptr.hbm [resolvable:$true] %s33
      %s35 = sshll.u32 [#allocation5], 4
      %s36 = int_to_ptr.vmem [resolvable:$true] %s35
      %41 = dma.hbm_to_vmem [thread:$0]  %s34, 256, %s36, [#allocation6], 128, 128, 8
    $region9: #{tpu_custom_call.1} parent=1 // pred_fallthru
      _
    // Predicated region
    $region10: #{tpu_custom_call.1} parent=1 // pred_check
      _
    $region11: #{tpu_custom_call.1} parent=1 // pred_check_branch
      %43 = sbr.rel (0) target = $region13
    $region12: #{tpu_custom_call.1} parent=1 // pred_region
      %45 = vsyncadd [#allocation6], 0
      %s46 = sshll.u32 %s2, 4
      %s47 = int_to_ptr.hbm [resolvable:$true] %s46
      %s48 = sshll.u32 [#allocation7], 4
      %s49 = int_to_ptr.vmem [resolvable:$true] %s48
      %54 = dma.hbm_to_vmem [thread:$0]  %s47, 4096, %s49, [#allocation6], 128, 128, 8
    $region13: #{tpu_custom_call.1} parent=1 // pred_fallthru
      _
    // Predicated region
    $region14: #{tpu_custom_call.1} parent=1 // pred_check
      _
    $region15: #{tpu_custom_call.1} parent=1 // pred_check_branch
      %56 = sbr.rel (0) target = $region17
    $region16: #{tpu_custom_call.1} parent=1 // pred_region
      %58 = vsyncadd [#allocation9], 0
      %s59 = sshll.u32 %s3, 4
      %s60 = int_to_ptr.hbm [resolvable:$true] %s59
      %s61 = sshll.u32 [#allocation8], 4
      %s62 = int_to_ptr.vmem [resolvable:$true] %s61
      %67 = dma.hbm_to_vmem [thread:$0]  %s60, 4096, %s62, [#allocation9], 128, 128, 8
    $region17: #{tpu_custom_call.1} parent=1 // pred_fallthru
      _
    // Predicated region
    $region18: #{tpu_custom_call.1} parent=1 // pred_check
      _
    $region19: #{tpu_custom_call.1} parent=1 // pred_check_branch
      %69 = sbr.rel (0) target = $region21
    $region20: #{tpu_custom_call.1} parent=1 // pred_region
      %71 = vsyncadd [#allocation9], 0
      %s72 = sshll.u32 %s4, 4
      %s73 = int_to_ptr.hbm [resolvable:$true] %s72
      %s74 = sshll.u32 [#allocation10], 4
      %s75 = int_to_ptr.vmem [resolvable:$true] %s74
      %80 = dma.hbm_to_vmem [thread:$0]  %s73, 2048, %s75, [#allocation9], 64, 64, 4
    $region21: #{tpu_custom_call.1} parent=1 // pred_fallthru
      _
    // Predicated region
    $region22: #{tpu_custom_call.1} parent=1 // pred_check
      _
    $region23: #{tpu_custom_call.1} parent=1 // pred_check_branch
      %82 = sbr.rel (0) target = $region25
    $region24: #{tpu_custom_call.1} parent=1 // pred_region
      %84 = vsyncadd [#allocation12], 0
      %s86 = sshll.u32 %s5, 4
      %s87 = int_to_ptr.hbm [resolvable:$true] %s86
      %s88 = sshll.u32 [#allocation11], 4
      %s89 = int_to_ptr.vmem [resolvable:$true] %s88
      %91 = dma.hbm_to_vmem [thread:$0]  %s87, 256, %s89, [#allocation12]
    $region25: #{tpu_custom_call.1} parent=1 // pred_fallthru
      _
    // Predicated region
    $region26: #{tpu_custom_call.1} parent=1 // pred_check
      _
    $region27: #{tpu_custom_call.1} parent=1 // pred_check_branch
      %93 = sbr.rel (0) target = $region29
    $region28: #{tpu_custom_call.1} parent=1 // pred_region
      %95 = dma.done [#allocation3], 128
    $region29: #{tpu_custom_call.1} parent=1 // pred_fallthru
      _
    // Predicated region
    $region30: #{tpu_custom_call.1} parent=1 // pred_check
      _
    $region31: #{tpu_custom_call.1} parent=1 // pred_check_branch
      %97 = sbr.rel (0) target = $region33
    $region32: #{tpu_custom_call.1} parent=1 // pred_region
      %99 = dma.done [#allocation6], 256
    $region33: #{tpu_custom_call.1} parent=1 // pred_fallthru
      _
    // Predicated region
    $region34: #{tpu_custom_call.1} parent=1 // pred_check
      _
    $region35: #{tpu_custom_call.1} parent=1 // pred_check_branch
      %101 = sbr.rel (0) target = $region37
    $region36: #{tpu_custom_call.1} parent=1 // pred_region
      %103 = dma.done [#allocation6], 4096
    $region37: #{tpu_custom_call.1} parent=1 // pred_fallthru
      _
    // Predicated region
    $region38: #{tpu_custom_call.1} parent=1 // pred_check
      _
    $region39: #{tpu_custom_call.1} parent=1 // pred_check_branch
      %105 = sbr.rel (0) target = $region41
    $region40: #{tpu_custom_call.1} parent=1 // pred_region
      %107 = dma.done [#allocation9], 4096
    $region41: #{tpu_custom_call.1} parent=1 // pred_fallthru
      _
    // Predicated region
    $region42: #{tpu_custom_call.1} parent=1 // pred_check
      _
    $region43: #{tpu_custom_call.1} parent=1 // pred_check_branch
      %109 = sbr.rel (0) target = $region45
    $region44: #{tpu_custom_call.1} parent=1 // pred_region
      %111 = dma.done [#allocation9], 2048
    $region45: #{tpu_custom_call.1} parent=1 // pred_fallthru
      _
    // Predicated region
    $region46: #{tpu_custom_call.1} parent=1 // pred_check
      _
    $region47: #{tpu_custom_call.1} parent=1 // pred_check_branch
      %113 = sbr.rel (0) target = $region49
    $region48: #{tpu_custom_call.1} parent=1 // pred_region
      %115 = dma.done [#allocation12], 256
    $region49: #{tpu_custom_call.1} parent=1 // pred_fallthru
      _
    %v117 = vld [vmem:[#allocation2] sm:$0xf]
    %v118 = vld [vmem:[#allocation2 + $0x4] sm:$0xf]
    %v119 = vld [vmem:[#allocation11] ss:$8 sm:$0x3]
    %s120 = scalar_lea.vmem [#allocation11], 1
    %v121 = vld [vmem:[%s120] ss:$8 sm:$0x3]
    %v122 = vld [vmem:[#allocation5] sm:$0xff]
    %v123 = vld [vmem:[#allocation5 + $0x8] sm:$0xff]
    %v126 = vunpack.c.l.b16 %v117
    %v127 = vunpack.c.l.b16 %v118
    %v128 = vpack.c.b16 %v127, %v126
    %v131 = vunpack.c.l.b16 %v122
    %v132 = vunpack.c.h.b16 %v122
    %v133 = vunpack.c.l.b16 %v123
    %v134 = vunpack.c.h.b16 %v123
    %v135 = vpack.c.b16 %v133, %v131
    %v136 = vpack.c.b16 %v134, %v132
    %vm139 = vcmask 130048
    %v141 = vsel %vm139, %v128, 0
    %143 = vmatpush.bf16.msra.mxu0 0
    %144 = vmatpush.bf16.msra.mxu0 0
    %145 = vmatpush.bf16.msra.mxu0 0
    %146 = vmatpush.bf16.msra.mxu0 0
    %147 = vmatpush.bf16.msra.mxu0 0
    %148 = vmatpush.bf16.msra.mxu0 0
    %149 = vmatpush.bf16.msra.mxu0 0
    %150 = vmatpush.bf16.msra.mxu0 %v135
    %151 = vmatmul.bf16.gmra.mxu0 %v141
    %v152 = vpop.f32.mrf.mxu0
    %v153 = vadd.f32 0.0, %v152
    %v154 = vpop.f32.mrf.mxu0
    %v155 = vadd.f32 0.0, %v154
    %156 = vdwg.mxu0
    %157 = vmatpush.bf16.msra.mxu0 0
    %158 = vmatpush.bf16.msra.mxu0 0
    %159 = vmatpush.bf16.msra.mxu0 0
    %160 = vmatpush.bf16.msra.mxu0 0
    %161 = vmatpush.bf16.msra.mxu0 0
    %162 = vmatpush.bf16.msra.mxu0 0
    %163 = vmatpush.bf16.msra.mxu0 0
    %164 = vmatpush.bf16.msra.mxu0 %v136
    %165 = vmatmul.bf16.gmra.mxu0 %v141
    %v166 = vpop.f32.mrf.mxu0
    %v167 = vadd.f32 0.0, %v166
    %v168 = vpop.f32.mrf.mxu0
    %v169 = vadd.f32 0.0, %v168
    %170 = vdwg.mxu0
    %v171 = vadd.f32 %v153, %v155
    %v172 = vrot.slane %v171, 4
    %v173 = vadd.f32 %v171, %v172
    %v174 = vrot.slane %v173, 2
    %v175 = vadd.f32 %v173, %v174
    %v176 = vrot.slane %v175, 1
    %v177 = vadd.f32 %v175, %v176
    %v178 = vadd.f32 %v167, %v169
    %v179 = vrot.slane %v178, 4
    %v180 = vadd.f32 %v178, %v179
    %v181 = vrot.slane %v180, 2
    %v182 = vadd.f32 %v180, %v181
    %v183 = vrot.slane %v182, 1
    %v184 = vadd.f32 %v182, %v183
    %v185 = vrcp.pop 16.0
    %v186 = vmul.f32 16.0, %v185
    %v187 = vsub.f32 1.0, %v186
    %v188 = vmul.f32 %v185, %v187
    %v189 = vadd.f32 %v185, %v188
    %vm190 = vweird.f32 %v185
    %v191 = vsel %vm190, %v185, %v189
    %v192 = vmul.f32 %v177, %v191
    %v193 = vmul.f32 %v184, %v191
    %v194 = vmul.f32 %v153, %v153
    %v195 = vmul.f32 %v167, %v167
    %v196 = vmul.f32 %v155, %v155
    %v197 = vmul.f32 %v169, %v169
    %v198 = vadd.f32 %v194, %v196
    %v199 = vrot.slane %v198, 4
    %v200 = vadd.f32 %v198, %v199
    %v201 = vrot.slane %v200, 2
    %v202 = vadd.f32 %v200, %v201
    %v203 = vrot.slane %v202, 1
    %v204 = vadd.f32 %v202, %v203
    %v205 = vadd.f32 %v195, %v197
    %v206 = vrot.slane %v205, 4
    %v207 = vadd.f32 %v205, %v206
    %v208 = vrot.slane %v207, 2
    %v209 = vadd.f32 %v207, %v208
    %v210 = vrot.slane %v209, 1
    %v211 = vadd.f32 %v209, %v210
    %v212 = vmul.f32 %v204, %v191
    %v213 = vmul.f32 %v211, %v191
    %v214 = vmul.f32 %v192, %v192
    %v215 = vmul.f32 %v193, %v193
    %v216 = vsub.f32 %v212, %v214
    %v217 = vsub.f32 %v213, %v215
    %v218 = vmax.f32 %v216, 0.0
    %v219 = vmax.f32 %v217, 0.0
    %v220 = vadd.f32 %v218, 1e-05
    %v221 = vadd.f32 %v219, 1e-05
    %v222 = vrsqrt.pop %v220
    %v223 = vmul.f32 %v222, %v220
    %v224 = vmul.f32 %v223, %v222
    %v225 = vmul.f32 0.5, %v224
    %v226 = vsub.f32 1.5, %v225
    %v227 = vmul.f32 %v222, %v226
    %vm228 = vweird.f32 %v220
    %vm229 = vweird.f32 %v222
    %vm230 = vmor %vm228, %vm229
    %v231 = vsel %vm230, %v222, %v227
    %v232 = vrsqrt.pop %v221
    %v233 = vmul.f32 %v232, %v221
    %v234 = vmul.f32 %v233, %v232
    %v235 = vmul.f32 0.5, %v234
    %v236 = vsub.f32 1.5, %v235
    %v237 = vmul.f32 %v232, %v236
    %vm238 = vweird.f32 %v221
    %vm239 = vweird.f32 %v232
    %vm240 = vmor %vm238, %vm239
    %v241 = vsel %vm240, %v232, %v237
    %v244 = vrot.slane %v241, 7
    %vm245 = vcmask 1040384
    %v246 = vsel %vm245, %v231, %v244
    %v248 = vmul.f32 %v119, %v246
    %v250 = vperm.slane %v248, 0
    %v251 = vperm.slane %v248, 1
    %v254 = vmul.f32 %v192, %v250
    %v255 = vmul.f32 %v193, %v251
    %v258 = vrot.slane %v255, 7
    %v259 = vsel %vm245, %v254, %v258
    %v261 = vsub.f32 %v121, %v259
    %v262 = vmul.f32 %v153, %v250
    %v263 = vmul.f32 %v167, %v251
    %v264 = vmul.f32 %v155, %v250
    %v265 = vmul.f32 %v169, %v251
    %v267 = vperm.slane %v261, 0
    %v268 = vperm.slane %v261, 1
    %v271 = vadd.f32 %v262, %v267
    %v272 = vadd.f32 %v263, %v268
    %v273 = vadd.f32 %v264, %v267
    %v274 = vadd.f32 %v265, %v268
    %v275 = vmax.f32 %v271, 0.0
    %v276 = vmax.f32 %v272, 0.0
    %v277 = vmax.f32 %v273, 0.0
    %v278 = vmax.f32 %v274, 0.0
    %s279 = scalar_lea.vmem [#allocation11], 2
    %v280 = vld [vmem:[%s279] ss:$8 sm:$0x3]
    %s281 = scalar_lea.vmem [#allocation11], 3
    %v282 = vld [vmem:[%s281] ss:$8 sm:$0x3]
    %v283 = vpack.c.bf16 %v277, %v275
    %v284 = vpack.c.bf16 %v278, %v276
    %v285 = vld [vmem:[#allocation7] sm:$0xff]
    %v286 = vld [vmem:[#allocation7 + $0x8] sm:$0xff]
    %v287 = vld [vmem:[#allocation7 + $0x10] sm:$0xff]
    %v288 = vld [vmem:[#allocation7 + $0x18] sm:$0xff]
    %v289 = vld [vmem:[#allocation7 + $0x20] sm:$0xff]
    %v290 = vld [vmem:[#allocation7 + $0x28] sm:$0xff]
    %v291 = vld [vmem:[#allocation7 + $0x30] sm:$0xff]
    %v292 = vld [vmem:[#allocation7 + $0x38] sm:$0xff]
    %v293 = vld [vmem:[#allocation7 + $0x40] sm:$0xff]
    %v294 = vld [vmem:[#allocation7 + $0x48] sm:$0xff]
    %v295 = vld [vmem:[#allocation7 + $0x50] sm:$0xff]
    %v296 = vld [vmem:[#allocation7 + $0x58] sm:$0xff]
    %v297 = vld [vmem:[#allocation7 + $0x60] sm:$0xff]
    %v298 = vld [vmem:[#allocation7 + $0x68] sm:$0xff]
    %v299 = vld [vmem:[#allocation7 + $0x70] sm:$0xff]
    %v300 = vld [vmem:[#allocation7 + $0x78] sm:$0xff]
    %v301 = vld [vmem:[#allocation7 + $0x80] sm:$0xff]
    %v302 = vld [vmem:[#allocation7 + $0x88] sm:$0xff]
    %v303 = vld [vmem:[#allocation7 + $0x90] sm:$0xff]
    %v304 = vld [vmem:[#allocation7 + $0x98] sm:$0xff]
    %v305 = vld [vmem:[#allocation7 + $0xa0] sm:$0xff]
    %v306 = vld [vmem:[#allocation7 + $0xa8] sm:$0xff]
    %v307 = vld [vmem:[#allocation7 + $0xb0] sm:$0xff]
    %v308 = vld [vmem:[#allocation7 + $0xb8] sm:$0xff]
    %v309 = vld [vmem:[#allocation7 + $0xc0] sm:$0xff]
    %v310 = vld [vmem:[#allocation7 + $0xc8] sm:$0xff]
    %v311 = vld [vmem:[#allocation7 + $0xd0] sm:$0xff]
    %v312 = vld [vmem:[#allocation7 + $0xd8] sm:$0xff]
    %v313 = vld [vmem:[#allocation7 + $0xe0] sm:$0xff]
    %v314 = vld [vmem:[#allocation7 + $0xe8] sm:$0xff]
    %v315 = vld [vmem:[#allocation7 + $0xf0] sm:$0xff]
    %v316 = vld [vmem:[#allocation7 + $0xf8] sm:$0xff]
    %v349 = vunpack.c.l.b16 %v285
    %v350 = vunpack.c.h.b16 %v285
    %v351 = vunpack.c.l.b16 %v286
    %v352 = vunpack.c.h.b16 %v286
    %v353 = vunpack.c.l.b16 %v287
    %v354 = vunpack.c.h.b16 %v287
    %v355 = vunpack.c.l.b16 %v288
    %v356 = vunpack.c.h.b16 %v288
    %v357 = vunpack.c.l.b16 %v289
    %v358 = vunpack.c.h.b16 %v289
    %v359 = vunpack.c.l.b16 %v290
    %v360 = vunpack.c.h.b16 %v290
    %v361 = vunpack.c.l.b16 %v291
    %v362 = vunpack.c.h.b16 %v291
    %v363 = vunpack.c.l.b16 %v292
    %v364 = vunpack.c.h.b16 %v292
    %v365 = vunpack.c.l.b16 %v293
    %v366 = vunpack.c.h.b16 %v293
    %v367 = vunpack.c.l.b16 %v294
    %v368 = vunpack.c.h.b16 %v294
    %v369 = vunpack.c.l.b16 %v295
    %v370 = vunpack.c.h.b16 %v295
    %v371 = vunpack.c.l.b16 %v296
    %v372 = vunpack.c.h.b16 %v296
    %v373 = vunpack.c.l.b16 %v297
    %v374 = vunpack.c.h.b16 %v297
    %v375 = vunpack.c.l.b16 %v298
    %v376 = vunpack.c.h.b16 %v298
    %v377 = vunpack.c.l.b16 %v299
    %v378 = vunpack.c.h.b16 %v299
    %v379 = vunpack.c.l.b16 %v300
    %v380 = vunpack.c.h.b16 %v300
    %v381 = vunpack.c.l.b16 %v301
    %v382 = vunpack.c.h.b16 %v301
    %v383 = vunpack.c.l.b16 %v302
    %v384 = vunpack.c.h.b16 %v302
    %v385 = vunpack.c.l.b16 %v303
    %v386 = vunpack.c.h.b16 %v303
    %v387 = vunpack.c.l.b16 %v304
    %v388 = vunpack.c.h.b16 %v304
    %v389 = vunpack.c.l.b16 %v305
    %v390 = vunpack.c.h.b16 %v305
    %v391 = vunpack.c.l.b16 %v306
    %v392 = vunpack.c.h.b16 %v306
    %v393 = vunpack.c.l.b16 %v307
    %v394 = vunpack.c.h.b16 %v307
    %v395 = vunpack.c.l.b16 %v308
    %v396 = vunpack.c.h.b16 %v308
    %v397 = vunpack.c.l.b16 %v309
    %v398 = vunpack.c.h.b16 %v309
    %v399 = vunpack.c.l.b16 %v310
    %v400 = vunpack.c.h.b16 %v310
    %v401 = vunpack.c.l.b16 %v311
    %v402 = vunpack.c.h.b16 %v311
    %v403 = vunpack.c.l.b16 %v312
    %v404 = vunpack.c.h.b16 %v312
    %v405 = vunpack.c.l.b16 %v313
    %v406 = vunpack.c.h.b16 %v313
    %v407 = vunpack.c.l.b16 %v314
    %v408 = vunpack.c.h.b16 %v314
    %v409 = vunpack.c.l.b16 %v315
    %v410 = vunpack.c.h.b16 %v315
    %v411 = vunpack.c.l.b16 %v316
    %v412 = vunpack.c.h.b16 %v316
    %v413 = vpack.c.b16 %v351, %v349
    %v414 = vpack.c.b16 %v352, %v350
    %v415 = vpack.c.b16 %v355, %v353
    %v416 = vpack.c.b16 %v356, %v354
    %v417 = vpack.c.b16 %v359, %v357
    %v418 = vpack.c.b16 %v360, %v358
    %v419 = vpack.c.b16 %v363, %v361
    %v420 = vpack.c.b16 %v364, %v362
    %v421 = vpack.c.b16 %v367, %v365
    %v422 = vpack.c.b16 %v368, %v366
    %v423 = vpack.c.b16 %v371, %v369
    %v424 = vpack.c.b16 %v372, %v370
    %v425 = vpack.c.b16 %v375, %v373
    %v426 = vpack.c.b16 %v376, %v374
    %v427 = vpack.c.b16 %v379, %v377
    %v428 = vpack.c.b16 %v380, %v378
    %v429 = vpack.c.b16 %v383, %v381
    %v430 = vpack.c.b16 %v384, %v382
    %v431 = vpack.c.b16 %v387, %v385
    %v432 = vpack.c.b16 %v388, %v386
    %v433 = vpack.c.b16 %v391, %v389
    %v434 = vpack.c.b16 %v392, %v390
    %v435 = vpack.c.b16 %v395, %v393
    %v436 = vpack.c.b16 %v396, %v394
    %v437 = vpack.c.b16 %v399, %v397
    %v438 = vpack.c.b16 %v400, %v398
    %v439 = vpack.c.b16 %v403, %v401
    %v440 = vpack.c.b16 %v404, %v402
    %v441 = vpack.c.b16 %v407, %v405
    %v442 = vpack.c.b16 %v408, %v406
    %v443 = vpack.c.b16 %v411, %v409
    %v444 = vpack.c.b16 %v412, %v410
    %477 = vmatpush.bf16.msra.mxu0 %v427
    %478 = vmatpush.bf16.msra.mxu0 %v425
    %479 = vmatpush.bf16.msra.mxu0 %v423
    %480 = vmatpush.bf16.msra.mxu0 %v421
    %481 = vmatpush.bf16.msra.mxu0 %v419
    %482 = vmatpush.bf16.msra.mxu0 %v417
    %483 = vmatpush.bf16.msra.mxu0 %v415
    %484 = vmatpush.bf16.msra.mxu0 %v413
    %485 = vmatmul.bf16.gmra.mxu0 %v283
    %v486 = vpop.f32.mrf.mxu0
    %v487 = vadd.f32 0.0, %v486
    %v488 = vpop.f32.mrf.mxu0
    %v489 = vadd.f32 0.0, %v488
    %490 = vdwg.mxu0
    %491 = vmatpush.bf16.msra.mxu0 %v443
    %492 = vmatpush.bf16.msra.mxu0 %v441
    %493 = vmatpush.bf16.msra.mxu0 %v439
    %494 = vmatpush.bf16.msra.mxu0 %v437
    %495 = vmatpush.bf16.msra.mxu0 %v435
    %496 = vmatpush.bf16.msra.mxu0 %v433
    %497 = vmatpush.bf16.msra.mxu0 %v431
    %498 = vmatpush.bf16.msra.mxu0 %v429
    %499 = vmatmul.bf16.gmra.mxu0 %v284
    %v500 = vpop.f32.mrf.mxu0
    %v501 = vadd.f32 %v487, %v500
    %v502 = vpop.f32.mrf.mxu0
    %v503 = vadd.f32 %v489, %v502
    %504 = vdwg.mxu0
    %505 = vmatpush.bf16.msra.mxu0 %v428
    %506 = vmatpush.bf16.msra.mxu0 %v426
    %507 = vmatpush.bf16.msra.mxu0 %v424
    %508 = vmatpush.bf16.msra.mxu0 %v422
    %509 = vmatpush.bf16.msra.mxu0 %v420
    %510 = vmatpush.bf16.msra.mxu0 %v418
    %511 = vmatpush.bf16.msra.mxu0 %v416
    %512 = vmatpush.bf16.msra.mxu0 %v414
    %513 = vmatmul.bf16.gmra.mxu0 %v283
    %v514 = vpop.f32.mrf.mxu0
    %v515 = vadd.f32 0.0, %v514
    %v516 = vpop.f32.mrf.mxu0
    %v517 = vadd.f32 0.0, %v516
    %518 = vdwg.mxu0
    %519 = vmatpush.bf16.msra.mxu0 %v444
    %520 = vmatpush.bf16.msra.mxu0 %v442
    %521 = vmatpush.bf16.msra.mxu0 %v440
    %522 = vmatpush.bf16.msra.mxu0 %v438
    %523 = vmatpush.bf16.msra.mxu0 %v436
    %524 = vmatpush.bf16.msra.mxu0 %v434
    %525 = vmatpush.bf16.msra.mxu0 %v432
    %526 = vmatpush.bf16.msra.mxu0 %v430
    %527 = vmatmul.bf16.gmra.mxu0 %v284
    %v528 = vpop.f32.mrf.mxu0
    %v529 = vadd.f32 %v515, %v528
    %v530 = vpop.f32.mrf.mxu0
    %v531 = vadd.f32 %v517, %v530
    %532 = vdwg.mxu0
    %v533 = vadd.f32 %v501, %v503
    %v534 = vrot.slane %v533, 4
    %v535 = vadd.f32 %v533, %v534
    %v536 = vrot.slane %v535, 2
    %v537 = vadd.f32 %v535, %v536
    %v538 = vrot.slane %v537, 1
    %v539 = vadd.f32 %v537, %v538
    %v540 = vadd.f32 %v529, %v531
    %v541 = vrot.slane %v540, 4
    %v542 = vadd.f32 %v540, %v541
    %v543 = vrot.slane %v542, 2
    %v544 = vadd.f32 %v542, %v543
    %v545 = vrot.slane %v544, 1
    %v546 = vadd.f32 %v544, %v545
    %v547 = vmul.f32 %v539, %v191
    %v548 = vmul.f32 %v546, %v191
    %v549 = vmul.f32 %v501, %v501
    %v550 = vmul.f32 %v529, %v529
    %v551 = vmul.f32 %v503, %v503
    %v552 = vmul.f32 %v531, %v531
    %v553 = vadd.f32 %v549, %v551
    %v554 = vrot.slane %v553, 4
    %v555 = vadd.f32 %v553, %v554
    %v556 = vrot.slane %v555, 2
    %v557 = vadd.f32 %v555, %v556
    %v558 = vrot.slane %v557, 1
    %v559 = vadd.f32 %v557, %v558
    %v560 = vadd.f32 %v550, %v552
    %v561 = vrot.slane %v560, 4
    %v562 = vadd.f32 %v560, %v561
    %v563 = vrot.slane %v562, 2
    %v564 = vadd.f32 %v562, %v563
    %v565 = vrot.slane %v564, 1
    %v566 = vadd.f32 %v564, %v565
    %v567 = vmul.f32 %v559, %v191
    %v568 = vmul.f32 %v566, %v191
    %v569 = vmul.f32 %v547, %v547
    %v570 = vmul.f32 %v548, %v548
    %v571 = vsub.f32 %v567, %v569
    %v572 = vsub.f32 %v568, %v570
    %v573 = vmax.f32 %v571, 0.0
    %v574 = vmax.f32 %v572, 0.0
    %v575 = vadd.f32 %v573, 1e-05
    %v576 = vadd.f32 %v574, 1e-05
    %v577 = vrsqrt.pop %v575
    %v578 = vmul.f32 %v577, %v575
    %v579 = vmul.f32 %v578, %v577
    %v580 = vmul.f32 0.5, %v579
    %v581 = vsub.f32 1.5, %v580
    %v582 = vmul.f32 %v577, %v581
    %vm583 = vweird.f32 %v575
    %vm584 = vweird.f32 %v577
    %vm585 = vmor %vm583, %vm584
    %v586 = vsel %vm585, %v577, %v582
    %v587 = vrsqrt.pop %v576
    %v588 = vmul.f32 %v587, %v576
    %v589 = vmul.f32 %v588, %v587
    %v590 = vmul.f32 0.5, %v589
    %v591 = vsub.f32 1.5, %v590
    %v592 = vmul.f32 %v587, %v591
    %vm593 = vweird.f32 %v576
    %vm594 = vweird.f32 %v587
    %vm595 = vmor %vm593, %vm594
    %v596 = vsel %vm595, %v587, %v592
    %v599 = vrot.slane %v596, 7
    %v600 = vsel %vm245, %v586, %v599
    %v602 = vmul.f32 %v280, %v600
    %v604 = vperm.slane %v602, 0
    %v605 = vperm.slane %v602, 1
    %v608 = vmul.f32 %v547, %v604
    %v609 = vmul.f32 %v548, %v605
    %v612 = vrot.slane %v609, 7
    %v613 = vsel %vm245, %v608, %v612
    %v615 = vsub.f32 %v282, %v613
    %v616 = vmul.f32 %v501, %v604
    %v617 = vmul.f32 %v529, %v605
    %v618 = vmul.f32 %v503, %v604
    %v619 = vmul.f32 %v531, %v605
    %v621 = vperm.slane %v615, 0
    %v622 = vperm.slane %v615, 1
    %v625 = vadd.f32 %v616, %v621
    %v626 = vadd.f32 %v617, %v622
    %v627 = vadd.f32 %v618, %v621
    %v628 = vadd.f32 %v619, %v622
    %v629 = vmax.f32 %v625, 0.0
    %v630 = vmax.f32 %v626, 0.0
    %v631 = vmax.f32 %v627, 0.0
    %v632 = vmax.f32 %v628, 0.0
    %s633 = scalar_lea.vmem [#allocation11], 4
    %v634 = vld [vmem:[%s633] ss:$8 sm:$0x3]
    %s635 = scalar_lea.vmem [#allocation11], 5
    %v636 = vld [vmem:[%s635] ss:$8 sm:$0x3]
    %v637 = vpack.c.bf16 %v631, %v629
    %v638 = vpack.c.bf16 %v632, %v630
    %v639 = vld [vmem:[#allocation8] sm:$0xff]
    %v640 = vld [vmem:[#allocation8 + $0x8] sm:$0xff]
    %v641 = vld [vmem:[#allocation8 + $0x10] sm:$0xff]
    %v642 = vld [vmem:[#allocation8 + $0x18] sm:$0xff]
    %v643 = vld [vmem:[#allocation8 + $0x20] sm:$0xff]
    %v644 = vld [vmem:[#allocation8 + $0x28] sm:$0xff]
    %v645 = vld [vmem:[#allocation8 + $0x30] sm:$0xff]
    %v646 = vld [vmem:[#allocation8 + $0x38] sm:$0xff]
    %v647 = vld [vmem:[#allocation8 + $0x40] sm:$0xff]
    %v648 = vld [vmem:[#allocation8 + $0x48] sm:$0xff]
    %v649 = vld [vmem:[#allocation8 + $0x50] sm:$0xff]
    %v650 = vld [vmem:[#allocation8 + $0x58] sm:$0xff]
    %v651 = vld [vmem:[#allocation8 + $0x60] sm:$0xff]
    %v652 = vld [vmem:[#allocation8 + $0x68] sm:$0xff]
    %v653 = vld [vmem:[#allocation8 + $0x70] sm:$0xff]
    %v654 = vld [vmem:[#allocation8 + $0x78] sm:$0xff]
    %v655 = vld [vmem:[#allocation8 + $0x80] sm:$0xff]
    %v656 = vld [vmem:[#allocation8 + $0x88] sm:$0xff]
    %v657 = vld [vmem:[#allocation8 + $0x90] sm:$0xff]
    %v658 = vld [vmem:[#allocation8 + $0x98] sm:$0xff]
    %v659 = vld [vmem:[#allocation8 + $0xa0] sm:$0xff]
    %v660 = vld [vmem:[#allocation8 + $0xa8] sm:$0xff]
    %v661 = vld [vmem:[#allocation8 + $0xb0] sm:$0xff]
    %v662 = vld [vmem:[#allocation8 + $0xb8] sm:$0xff]
    %v663 = vld [vmem:[#allocation8 + $0xc0] sm:$0xff]
    %v664 = vld [vmem:[#allocation8 + $0xc8] sm:$0xff]
    %v665 = vld [vmem:[#allocation8 + $0xd0] sm:$0xff]
    %v666 = vld [vmem:[#allocation8 + $0xd8] sm:$0xff]
    %v667 = vld [vmem:[#allocation8 + $0xe0] sm:$0xff]
    %v668 = vld [vmem:[#allocation8 + $0xe8] sm:$0xff]
    %v669 = vld [vmem:[#allocation8 + $0xf0] sm:$0xff]
    %v670 = vld [vmem:[#allocation8 + $0xf8] sm:$0xff]
    %v703 = vunpack.c.l.b16 %v639
    %v704 = vunpack.c.h.b16 %v639
    %v705 = vunpack.c.l.b16 %v640
    %v706 = vunpack.c.h.b16 %v640
    %v707 = vunpack.c.l.b16 %v641
    %v708 = vunpack.c.h.b16 %v641
    %v709 = vunpack.c.l.b16 %v642
    %v710 = vunpack.c.h.b16 %v642
    %v711 = vunpack.c.l.b16 %v643
    %v712 = vunpack.c.h.b16 %v643
    %v713 = vunpack.c.l.b16 %v644
    %v714 = vunpack.c.h.b16 %v644
    %v715 = vunpack.c.l.b16 %v645
    %v716 = vunpack.c.h.b16 %v645
    %v717 = vunpack.c.l.b16 %v646
    %v718 = vunpack.c.h.b16 %v646
    %v719 = vunpack.c.l.b16 %v647
    %v720 = vunpack.c.h.b16 %v647
    %v721 = vunpack.c.l.b16 %v648
    %v722 = vunpack.c.h.b16 %v648
    %v723 = vunpack.c.l.b16 %v649
    %v724 = vunpack.c.h.b16 %v649
    %v725 = vunpack.c.l.b16 %v650
    %v726 = vunpack.c.h.b16 %v650
    %v727 = vunpack.c.l.b16 %v651
    %v728 = vunpack.c.h.b16 %v651
    %v729 = vunpack.c.l.b16 %v652
    %v730 = vunpack.c.h.b16 %v652
    %v731 = vunpack.c.l.b16 %v653
    %v732 = vunpack.c.h.b16 %v653
    %v733 = vunpack.c.l.b16 %v654
    %v734 = vunpack.c.h.b16 %v654
    %v735 = vunpack.c.l.b16 %v655
    %v736 = vunpack.c.h.b16 %v655
    %v737 = vunpack.c.l.b16 %v656
    %v738 = vunpack.c.h.b16 %v656
    %v739 = vunpack.c.l.b16 %v657
    %v740 = vunpack.c.h.b16 %v657
    %v741 = vunpack.c.l.b16 %v658
    %v742 = vunpack.c.h.b16 %v658
    %v743 = vunpack.c.l.b16 %v659
    %v744 = vunpack.c.h.b16 %v659
    %v745 = vunpack.c.l.b16 %v660
    %v746 = vunpack.c.h.b16 %v660
    %v747 = vunpack.c.l.b16 %v661
    %v748 = vunpack.c.h.b16 %v661
    %v749 = vunpack.c.l.b16 %v662
    %v750 = vunpack.c.h.b16 %v662
    %v751 = vunpack.c.l.b16 %v663
    %v752 = vunpack.c.h.b16 %v663
    %v753 = vunpack.c.l.b16 %v664
    %v754 = vunpack.c.h.b16 %v664
    %v755 = vunpack.c.l.b16 %v665
    %v756 = vunpack.c.h.b16 %v665
    %v757 = vunpack.c.l.b16 %v666
    %v758 = vunpack.c.h.b16 %v666
    %v759 = vunpack.c.l.b16 %v667
    %v760 = vunpack.c.h.b16 %v667
    %v761 = vunpack.c.l.b16 %v668
    %v762 = vunpack.c.h.b16 %v668
    %v763 = vunpack.c.l.b16 %v669
    %v764 = vunpack.c.h.b16 %v669
    %v765 = vunpack.c.l.b16 %v670
    %v766 = vunpack.c.h.b16 %v670
    %v767 = vpack.c.b16 %v705, %v703
    %v768 = vpack.c.b16 %v706, %v704
    %v769 = vpack.c.b16 %v709, %v707
    %v770 = vpack.c.b16 %v710, %v708
    %v771 = vpack.c.b16 %v713, %v711
    %v772 = vpack.c.b16 %v714, %v712
    %v773 = vpack.c.b16 %v717, %v715
    %v774 = vpack.c.b16 %v718, %v716
    %v775 = vpack.c.b16 %v721, %v719
    %v776 = vpack.c.b16 %v722, %v720
    %v777 = vpack.c.b16 %v725, %v723
    %v778 = vpack.c.b16 %v726, %v724
    %v779 = vpack.c.b16 %v729, %v727
    %v780 = vpack.c.b16 %v730, %v728
    %v781 = vpack.c.b16 %v733, %v731
    %v782 = vpack.c.b16 %v734, %v732
    %v783 = vpack.c.b16 %v737, %v735
    %v784 = vpack.c.b16 %v738, %v736
    %v785 = vpack.c.b16 %v741, %v739
    %v786 = vpack.c.b16 %v742, %v740
    %v787 = vpack.c.b16 %v745, %v743
    %v788 = vpack.c.b16 %v746, %v744
    %v789 = vpack.c.b16 %v749, %v747
    %v790 = vpack.c.b16 %v750, %v748
    %v791 = vpack.c.b16 %v753, %v751
    %v792 = vpack.c.b16 %v754, %v752
    %v793 = vpack.c.b16 %v757, %v755
    %v794 = vpack.c.b16 %v758, %v756
    %v795 = vpack.c.b16 %v761, %v759
    %v796 = vpack.c.b16 %v762, %v760
    %v797 = vpack.c.b16 %v765, %v763
    %v798 = vpack.c.b16 %v766, %v764
    %831 = vmatpush.bf16.msra.mxu0 %v781
    %832 = vmatpush.bf16.msra.mxu0 %v779
    %833 = vmatpush.bf16.msra.mxu0 %v777
    %834 = vmatpush.bf16.msra.mxu0 %v775
    %835 = vmatpush.bf16.msra.mxu0 %v773
    %836 = vmatpush.bf16.msra.mxu0 %v771
    %837 = vmatpush.bf16.msra.mxu0 %v769
    %838 = vmatpush.bf16.msra.mxu0 %v767
    %839 = vmatmul.bf16.gmra.mxu0 %v637
    %v840 = vpop.f32.mrf.mxu0
    %v841 = vadd.f32 0.0, %v840
    %v842 = vpop.f32.mrf.mxu0
    %v843 = vadd.f32 0.0, %v842
    %844 = vdwg.mxu0
    %845 = vmatpush.bf16.msra.mxu0 %v797
    %846 = vmatpush.bf16.msra.mxu0 %v795
    %847 = vmatpush.bf16.msra.mxu0 %v793
    %848 = vmatpush.bf16.msra.mxu0 %v791
    %849 = vmatpush.bf16.msra.mxu0 %v789
    %850 = vmatpush.bf16.msra.mxu0 %v787
    %851 = vmatpush.bf16.msra.mxu0 %v785
    %852 = vmatpush.bf16.msra.mxu0 %v783
    %853 = vmatmul.bf16.gmra.mxu0 %v638
    %v854 = vpop.f32.mrf.mxu0
    %v855 = vadd.f32 %v841, %v854
    %v856 = vpop.f32.mrf.mxu0
    %v857 = vadd.f32 %v843, %v856
    %858 = vdwg.mxu0
    %859 = vmatpush.bf16.msra.mxu0 %v782
    %860 = vmatpush.bf16.msra.mxu0 %v780
    %861 = vmatpush.bf16.msra.mxu0 %v778
    %862 = vmatpush.bf16.msra.mxu0 %v776
    %863 = vmatpush.bf16.msra.mxu0 %v774
    %864 = vmatpush.bf16.msra.mxu0 %v772
    %865 = vmatpush.bf16.msra.mxu0 %v770
    %866 = vmatpush.bf16.msra.mxu0 %v768
    %867 = vmatmul.bf16.gmra.mxu0 %v637
    %v868 = vpop.f32.mrf.mxu0
    %v869 = vadd.f32 0.0, %v868
    %v870 = vpop.f32.mrf.mxu0
    %v871 = vadd.f32 0.0, %v870
    %872 = vdwg.mxu0
    %873 = vmatpush.bf16.msra.mxu0 %v798
    %874 = vmatpush.bf16.msra.mxu0 %v796
    %875 = vmatpush.bf16.msra.mxu0 %v794
    %876 = vmatpush.bf16.msra.mxu0 %v792
    %877 = vmatpush.bf16.msra.mxu0 %v790
    %878 = vmatpush.bf16.msra.mxu0 %v788
    %879 = vmatpush.bf16.msra.mxu0 %v786
    %880 = vmatpush.bf16.msra.mxu0 %v784
    %881 = vmatmul.bf16.gmra.mxu0 %v638
    %v882 = vpop.f32.mrf.mxu0
    %v883 = vadd.f32 %v869, %v882
    %v884 = vpop.f32.mrf.mxu0
    %v885 = vadd.f32 %v871, %v884
    %886 = vdwg.mxu0
    %v887 = vadd.f32 %v855, %v857
    %v888 = vrot.slane %v887, 4
    %v889 = vadd.f32 %v887, %v888
    %v890 = vrot.slane %v889, 2
    %v891 = vadd.f32 %v889, %v890
    %v892 = vrot.slane %v891, 1
    %v893 = vadd.f32 %v891, %v892
    %v894 = vadd.f32 %v883, %v885
    %v895 = vrot.slane %v894, 4
    %v896 = vadd.f32 %v894, %v895
    %v897 = vrot.slane %v896, 2
    %v898 = vadd.f32 %v896, %v897
    %v899 = vrot.slane %v898, 1
    %v900 = vadd.f32 %v898, %v899
    %v901 = vmul.f32 %v893, %v191
    %v902 = vmul.f32 %v900, %v191
    %v903 = vmul.f32 %v855, %v855
    %v904 = vmul.f32 %v883, %v883
    %v905 = vmul.f32 %v857, %v857
    %v906 = vmul.f32 %v885, %v885
    %v907 = vadd.f32 %v903, %v905
    %v908 = vrot.slane %v907, 4
    %v909 = vadd.f32 %v907, %v908
    %v910 = vrot.slane %v909, 2
    %v911 = vadd.f32 %v909, %v910
    %v912 = vrot.slane %v911, 1
    %v913 = vadd.f32 %v911, %v912
    %v914 = vadd.f32 %v904, %v906
    %v915 = vrot.slane %v914, 4
    %v916 = vadd.f32 %v914, %v915
    %v917 = vrot.slane %v916, 2
    %v918 = vadd.f32 %v916, %v917
    %v919 = vrot.slane %v918, 1
    %v920 = vadd.f32 %v918, %v919
    %v921 = vmul.f32 %v913, %v191
    %v922 = vmul.f32 %v920, %v191
    %v923 = vmul.f32 %v901, %v901
    %v924 = vmul.f32 %v902, %v902
    %v925 = vsub.f32 %v921, %v923
    %v926 = vsub.f32 %v922, %v924
    %v927 = vmax.f32 %v925, 0.0
    %v928 = vmax.f32 %v926, 0.0
    %v929 = vadd.f32 %v927, 1e-05
    %v930 = vadd.f32 %v928, 1e-05
    %v931 = vrsqrt.pop %v929
    %v932 = vmul.f32 %v931, %v929
    %v933 = vmul.f32 %v932, %v931
    %v934 = vmul.f32 0.5, %v933
    %v935 = vsub.f32 1.5, %v934
    %v936 = vmul.f32 %v931, %v935
    %vm937 = vweird.f32 %v929
    %vm938 = vweird.f32 %v931
    %vm939 = vmor %vm937, %vm938
    %v940 = vsel %vm939, %v931, %v936
    %v941 = vrsqrt.pop %v930
    %v942 = vmul.f32 %v941, %v930
    %v943 = vmul.f32 %v942, %v941
    %v944 = vmul.f32 0.5, %v943
    %v945 = vsub.f32 1.5, %v944
    %v946 = vmul.f32 %v941, %v945
    %vm947 = vweird.f32 %v930
    %vm948 = vweird.f32 %v941
    %vm949 = vmor %vm947, %vm948
    %v950 = vsel %vm949, %v941, %v946
    %v953 = vrot.slane %v950, 7
    %v954 = vsel %vm245, %v940, %v953
    %v956 = vmul.f32 %v634, %v954
    %v958 = vperm.slane %v956, 0
    %v959 = vperm.slane %v956, 1
    %v962 = vmul.f32 %v901, %v958
    %v963 = vmul.f32 %v902, %v959
    %v966 = vrot.slane %v963, 7
    %v967 = vsel %vm245, %v962, %v966
    %v969 = vsub.f32 %v636, %v967
    %v970 = vmul.f32 %v855, %v958
    %v971 = vmul.f32 %v883, %v959
    %v972 = vmul.f32 %v857, %v958
    %v973 = vmul.f32 %v885, %v959
    %v975 = vperm.slane %v969, 0
    %v976 = vperm.slane %v969, 1
    %v979 = vadd.f32 %v970, %v975
    %v980 = vadd.f32 %v971, %v976
    %v981 = vadd.f32 %v972, %v975
    %v982 = vadd.f32 %v973, %v976
    %v983 = vmax.f32 %v979, 0.0
    %v984 = vmax.f32 %v980, 0.0
    %v985 = vmax.f32 %v981, 0.0
    %v986 = vmax.f32 %v982, 0.0
    %v987 = vpack.c.bf16 %v985, %v983
    %v988 = vpack.c.bf16 %v986, %v984
    %v989 = vld [vmem:[#allocation10] sm:$0xf]
    %v990 = vld [vmem:[#allocation10 + $0x4] sm:$0xf]
    %v991 = vld [vmem:[#allocation10 + $0x8] sm:$0xf]
    %v992 = vld [vmem:[#allocation10 + $0xc] sm:$0xf]
    %v993 = vld [vmem:[#allocation10 + $0x10] sm:$0xf]
    %v994 = vld [vmem:[#allocation10 + $0x14] sm:$0xf]
    %v995 = vld [vmem:[#allocation10 + $0x18] sm:$0xf]
    %v996 = vld [vmem:[#allocation10 + $0x1c] sm:$0xf]
    %v997 = vld [vmem:[#allocation10 + $0x20] sm:$0xf]
    %v998 = vld [vmem:[#allocation10 + $0x24] sm:$0xf]
    %v999 = vld [vmem:[#allocation10 + $0x28] sm:$0xf]
    %v1000 = vld [vmem:[#allocation10 + $0x2c] sm:$0xf]
    %v1001 = vld [vmem:[#allocation10 + $0x30] sm:$0xf]
    %v1002 = vld [vmem:[#allocation10 + $0x34] sm:$0xf]
    %v1003 = vld [vmem:[#allocation10 + $0x38] sm:$0xf]
    %v1004 = vld [vmem:[#allocation10 + $0x3c] sm:$0xf]
    %v1005 = vld [vmem:[#allocation10 + $0x40] sm:$0xf]
    %v1006 = vld [vmem:[#allocation10 + $0x44] sm:$0xf]
    %v1007 = vld [vmem:[#allocation10 + $0x48] sm:$0xf]
    %v1008 = vld [vmem:[#allocation10 + $0x4c] sm:$0xf]
    %v1009 = vld [vmem:[#allocation10 + $0x50] sm:$0xf]
    %v1010 = vld [vmem:[#allocation10 + $0x54] sm:$0xf]
    %v1011 = vld [vmem:[#allocation10 + $0x58] sm:$0xf]
    %v1012 = vld [vmem:[#allocation10 + $0x5c] sm:$0xf]
    %v1013 = vld [vmem:[#allocation10 + $0x60] sm:$0xf]
    %v1014 = vld [vmem:[#allocation10 + $0x64] sm:$0xf]
    %v1015 = vld [vmem:[#allocation10 + $0x68] sm:$0xf]
    %v1016 = vld [vmem:[#allocation10 + $0x6c] sm:$0xf]
    %v1017 = vld [vmem:[#allocation10 + $0x70] sm:$0xf]
    %v1018 = vld [vmem:[#allocation10 + $0x74] sm:$0xf]
    %v1019 = vld [vmem:[#allocation10 + $0x78] sm:$0xf]
    %v1020 = vld [vmem:[#allocation10 + $0x7c] sm:$0xf]
    %v1021 = vld [vmem:[#allocation11 + $0x6] ss:$0 sm:$0xff]
    %v1054 = vunpack.c.l.b16 %v989
    %v1055 = vunpack.c.l.b16 %v990
    %v1056 = vunpack.c.l.b16 %v991
    %v1057 = vunpack.c.l.b16 %v992
    %v1058 = vunpack.c.l.b16 %v993
    %v1059 = vunpack.c.l.b16 %v994
    %v1060 = vunpack.c.l.b16 %v995
    %v1061 = vunpack.c.l.b16 %v996
    %v1062 = vunpack.c.l.b16 %v997
    %v1063 = vunpack.c.l.b16 %v998
    %v1064 = vunpack.c.l.b16 %v999
    %v1065 = vunpack.c.l.b16 %v1000
    %v1066 = vunpack.c.l.b16 %v1001
    %v1067 = vunpack.c.l.b16 %v1002
    %v1068 = vunpack.c.l.b16 %v1003
    %v1069 = vunpack.c.l.b16 %v1004
    %v1070 = vunpack.c.l.b16 %v1005
    %v1071 = vunpack.c.l.b16 %v1006
    %v1072 = vunpack.c.l.b16 %v1007
    %v1073 = vunpack.c.l.b16 %v1008
    %v1074 = vunpack.c.l.b16 %v1009
    %v1075 = vunpack.c.l.b16 %v1010
    %v1076 = vunpack.c.l.b16 %v1011
    %v1077 = vunpack.c.l.b16 %v1012
    %v1078 = vunpack.c.l.b16 %v1013
    %v1079 = vunpack.c.l.b16 %v1014
    %v1080 = vunpack.c.l.b16 %v1015
    %v1081 = vunpack.c.l.b16 %v1016
    %v1082 = vunpack.c.l.b16 %v1017
    %v1083 = vunpack.c.l.b16 %v1018
    %v1084 = vunpack.c.l.b16 %v1019
    %v1085 = vunpack.c.l.b16 %v1020
    %v1086 = vpack.c.b16 %v1055, %v1054
    %v1087 = vpack.c.b16 %v1057, %v1056
    %v1088 = vpack.c.b16 %v1059, %v1058
    %v1089 = vpack.c.b16 %v1061, %v1060
    %v1090 = vpack.c.b16 %v1063, %v1062
    %v1091 = vpack.c.b16 %v1065, %v1064
    %v1092 = vpack.c.b16 %v1067, %v1066
    %v1093 = vpack.c.b16 %v1069, %v1068
    %v1094 = vpack.c.b16 %v1071, %v1070
    %v1095 = vpack.c.b16 %v1073, %v1072
    %v1096 = vpack.c.b16 %v1075, %v1074
    %v1097 = vpack.c.b16 %v1077, %v1076
    %v1098 = vpack.c.b16 %v1079, %v1078
    %v1099 = vpack.c.b16 %v1081, %v1080
    %v1100 = vpack.c.b16 %v1083, %v1082
    %v1101 = vpack.c.b16 %v1085, %v1084
    %1118 = vmatpush.bf16.msra.mxu0 %v1093
    %1119 = vmatpush.bf16.msra.mxu0 %v1092
    %1120 = vmatpush.bf16.msra.mxu0 %v1091
    %1121 = vmatpush.bf16.msra.mxu0 %v1090
    %1122 = vmatpush.bf16.msra.mxu0 %v1089
    %1123 = vmatpush.bf16.msra.mxu0 %v1088
    %1124 = vmatpush.bf16.msra.mxu0 %v1087
    %1125 = vmatpush.bf16.msra.mxu0 %v1086
    %1126 = vmatmul.bf16.gmra.mxu0 %v987
    %v1127 = vpop.f32.mrf.mxu0
    %v1128 = vadd.f32 %v1021, %v1127
    %v1129 = vpop.f32.mrf.mxu0
    %v1130 = vadd.f32 %v1021, %v1129
    %1131 = vdwg.mxu0
    %1132 = vmatpush.bf16.msra.mxu0 %v1101
    %1133 = vmatpush.bf16.msra.mxu0 %v1100
    %1134 = vmatpush.bf16.msra.mxu0 %v1099
    %1135 = vmatpush.bf16.msra.mxu0 %v1098
    %1136 = vmatpush.bf16.msra.mxu0 %v1097
    %1137 = vmatpush.bf16.msra.mxu0 %v1096
    %1138 = vmatpush.bf16.msra.mxu0 %v1095
    %1139 = vmatpush.bf16.msra.mxu0 %v1094
    %1140 = vmatmul.bf16.gmra.mxu0 %v988
    %v1141 = vpop.f32.mrf.mxu0
    %v1142 = vadd.f32 %v1128, %v1141
    %v1143 = vpop.f32.mrf.mxu0
    %v1144 = vadd.f32 %v1130, %v1143
    %1145 = vdwg.mxu0
    %1146 = vst [vmem:[#allocation13] sm:$0xff] %v1142
    %1147 = vst [vmem:[#allocation13 + $0x8] sm:$0xff] %v1144
    // Predicated region
    $region50: #{tpu_custom_call.1} parent=1 // pred_check
      _
    $region51: #{tpu_custom_call.1} parent=1 // pred_check_branch
      %1149 = sbr.rel (0) target = $region53
    $region52: #{tpu_custom_call.1} parent=1 // pred_region
      %1151 = vsyncadd [#allocation4], 0
      %s1152 = sshll.u32 [#allocation13], 4
      %s1153 = int_to_ptr.vmem [resolvable:$true] %s1152
      %s1154 = sshll.u32 %s6, 4
      %s1155 = int_to_ptr.hbm [resolvable:$true] %s1154
      %1160 = dma.vmem_to_hbm [thread:$0]  %s1153, 256, %s1155, [#allocation4], 128, 128, 8
    $region53: #{tpu_custom_call.1} parent=1 // pred_fallthru
      _
    // Predicated region
    $region54: #{tpu_custom_call.1} parent=1 // pred_check
      _
    $region55: #{tpu_custom_call.1} parent=1 // pred_check_branch
      %1162 = sbr.rel (0) target = $region57
    $region56: #{tpu_custom_call.1} parent=1 // pred_region
      %1164 = dma.done [#allocation4], 256
    $region57: #{tpu_custom_call.1} parent=1 // pred_fallthru
      _
    %1165 = vsyncpa [#allocation3], 1
    %1166 = vsyncpa [#allocation6], 1
    %1167 = vsyncpa [#allocation9], 1
    %1168 = vsyncpa [#allocation12], 1
    %1169 = vsyncpa [#allocation4], 1

</llo_original>
